<compile_context>
chip_gen: v7x
topology: tpu7x:2x2x1
jax: 0.10.0
libtpu: 0.0.40
codegen_flags: <defaults>
</compile_context>

<pallas_src>
import jax
import jax.numpy as jnp
from jax.experimental import pallas as pl
from jax.experimental.pallas import tpu as pltpu


def _copy_kernel(x_ref, o_ref):
    # Straight 2D copy: both refs are (TB, TF) lane/sublane-dense VMEM tiles.
    o_ref[...] = x_ref[...]


def _vmem_capacity_bytes() -> int:
    """Physical VMEM per TensorCore; conservative fallback if query fails."""
    try:
        return int(pltpu.get_tpu_info().vmem_capacity_bytes)
    except Exception:  # pragma: no cover - e.g. interpret mode / older jax
        return 64 * 1024 * 1024  # v7x per-TC size (the smallest of the fleet)


def _pick_tiles(n: int, flat: int, dtype) -> tuple[int, int, int]:
    """Returns (row_tile, lane_tile, vmem_limit_bytes)."""
    itemsize = jnp.dtype(dtype).itemsize

    # Packing-aware sublane multiple: 8 (f32), 16 (bf16/f16), 32 (int8/fp8).
    sub = 8 * max(1, 4 // itemsize)

    # Lane (last-dim) tile: multiple of 128 for lane-dense vld/vst.  Chunk the
    # lane axis even when flat % 128 != 0 (Pallas masks the last block) so a
    # huge odd `flat` can never blow past VMEM.
    lane_cap = 8192  # elems, multiple of 128
    tf = flat if flat <= lane_cap else lane_cap

    # Block byte budget: ~4-8 MiB per block, such that the pipelined footprint
    # (in + out, double buffered = 4x block) stays under ~48 MiB and under
    # ~75% of this chip's VMEM (v7x: 64 MiB per TensorCore).
    vmem_cap = _vmem_capacity_bytes()
    total_budget = min(48 * 1024 * 1024, int(vmem_cap * 0.75))
    block_budget = min(8 * 1024 * 1024, max(1 << 20, total_budget // 4))

    if n <= sub:
        # Full-extent rows: always legal, keeps stores unmasked and avoids
        # touching padded HBM rows.
        tb = n
    else:
        rows = max(sub, block_budget // max(1, tf * itemsize))
        tb = max(sub, (rows // sub) * sub)
        if tb > n:
            tb = n  # clamp to full extent instead of rounding past n

    block_bytes = tb * tf * itemsize
    # in + out, double-buffered, plus headroom for compiler scratch; never
    # below a 32 MiB floor (>= v5e's 16 MiB default) nor above physical VMEM.
    vmem_limit = min(vmem_cap, max(32 * 1024 * 1024, 4 * block_bytes + (4 << 20)))
    return tb, tf, vmem_limit


def serialize(x: jax.Array) -> jax.Array:
    """Pallas equivalent of torch `x.view(x.size(0), -1)` for NCHW input."""
    n = x.shape[0]
    flat = 1
    for d in x.shape[1:]:
        flat *= d

    # Free, metadata-only flatten (matches torch .view on contiguous input).
    x2d = x.reshape(n, flat)

    tb, tf, vmem_limit = _pick_tiles(n, flat, x.dtype)
    grid = (pl.cdiv(n, tb), pl.cdiv(flat, tf))
    itemsize = jnp.dtype(x.dtype).itemsize

    return pl.pallas_call(
        _copy_kernel,
        out_shape=jax.ShapeDtypeStruct((n, flat), x.dtype),
        grid_spec=pltpu.PrefetchScalarGridSpec(
            num_scalar_prefetch=0,
            grid=grid,
            in_specs=[pl.BlockSpec((tb, tf), lambda i, j: (i, j))],
            out_specs=pl.BlockSpec((tb, tf), lambda i, j: (i, j)),
        ),
        # Output aliases the (reshaped, contiguous) input: no second HBM
        # buffer, donation-friendly.
        input_output_aliases={0: 0},
        # Purely bandwidth-bound custom call — help XLA schedule around it.
        cost_estimate=pl.CostEstimate(
            flops=0,
            transcendentals=0,
            bytes_accessed=2 * n * flat * itemsize,
        ),
        compiler_params=pltpu.CompilerParams(
            # Both grid axes are fully independent copies (megacore-friendly).
            dimension_semantics=("parallel", "parallel"),
            vmem_limit_bytes=vmem_limit,
        ),
    )(x2d)


if __name__ == "__main__":
    key = jax.random.PRNGKey(0)
    # Small shapes consistent with the module's docstring example.
    x = jax.random.normal(key, (2, 4, 16, 16), dtype=jnp.float32)

    # Compute the reference on host BEFORE the (potentially aliasing) kernel.
    ref = jax.device_get(x).reshape(x.shape[0], -1)

    out = serialize(x)
    jax.block_until_ready(out)

    # Correctness check vs. plain reshape (== torch .view semantics).
    assert out.shape == (2, 4 * 16 * 16)
    assert out.dtype == x.dtype
    assert jnp.array_equal(out, jnp.asarray(ref))

    print("KERNEL_OK")
</pallas_src>

<mosaic_0001>
module attributes {stable_mosaic.version = 11 : i64} {
  func.func @_copy_kernel(%arg0: i32, %arg1: i32, %arg2: memref<2x1024xf32, #tpu.memory_space<vmem>>, %arg3: memref<2x1024xf32, #tpu.memory_space<vmem>>) attributes {dimension_semantics = [#tpu.dimension_semantics<parallel>, #tpu.dimension_semantics<parallel>], iteration_bounds = array<i64: 1, 1>, scalar_prefetch = 0 : i64, scratch_operands = 0 : i64, tpu.core_type = #tpu.core_type<tc>, window_params = [{transform_indices = @transform_0, window_bounds = array<i64: 2, 1024>}, {transform_indices = @transform_1, window_bounds = array<i64: 2, 1024>}]} {
    %c0 = arith.constant 0 : index
    %c0_0 = arith.constant 0 : index
    %0 = vector.load %arg2[%c0, %c0_0] : memref<2x1024xf32, #tpu.memory_space<vmem>>, vector<2x1024xf32>
    %c0_1 = arith.constant 0 : index
    %c0_2 = arith.constant 0 : index
    %1 = vector.load %arg3[%c0_1, %c0_2] : memref<2x1024xf32, #tpu.memory_space<vmem>>, vector<2x1024xf32>
    tpu.vector_store %arg3[%c0_1, %c0_2], %0 {strides = array<i32>} : memref<2x1024xf32, #tpu.memory_space<vmem>>, vector<2x1024xf32>,
    return
  }
  func.func @transform_0(%arg0: i32, %arg1: i32) -> (i32, i32) {
    %c0_i32 = arith.constant 0 : i32
    return %arg0, %arg1 : i32, i32
  }
  func.func @transform_1(%arg0: i32, %arg1: i32) -> (i32, i32) {
    %c0_i32 = arith.constant 0 : i32
    return %arg0, %arg1 : i32, i32
  }
}

</mosaic_0001>

<llo_original>
// kernel: tpu_custom_call.1
$region0: #{tpu_custom_call.1}
  #allocation0 [shape = 'u32[]', space=smem, size = 0x4, offset = 0x4, fixed_abs, tag = 'smem constant byte address 0x4 - core index']
  #allocation1 [shape = 'u32[144,128]{1,0:T(1,128)}', space=vmem, size = 0x12000, scoped, tag = 'internal scratch']
  %s0 = inlined_call_operand.hbm [shape: f32[2,1024], index: 0, kind: input, shape index: {}, may-alias: {0,1}]
  %s1 = inlined_call_operand.hbm [shape: f32[2,1024], index: 1, kind: output, shape index: {}, may-alias: {0,1}]
  %s2 = sld [smem:[#allocation0]]
  $region18: #{tpu_custom_call.1} parent=0
    _
  %s4 = ssub.s32 1, %s2
  %s5 = scalar_select 0, %s4, %s2
  $region1: #{tpu_custom_call.1} parent=0
    #allocation2 [shape = 'u8[8192]{0}', space=vmem, size = 0x2000, scoped, tag = 'input window, operand 0, single buffered']
    #allocation3 [shape = 's32[1]{0}', space=sflag, size = 0x4, scoped, tag = 'scoped memory for tpu_custom_call.1']
    #allocation4 [shape = 's32[1]{0}', space=sflag, size = 0x4, scoped, tag = 'scoped memory for tpu_custom_call.1']
    #allocation5 [shape = 'u8[8192]{0}', space=vmem, size = 0x2000, scoped, tag = 'output window, operand 0, single buffered']
    %6 = vsyncpa [#allocation3], 0
    %7 = vsyncpa [#allocation4], 0
    // Predicated region
    $region2: #{tpu_custom_call.1} parent=1 // pred_check
      _
    $region3: #{tpu_custom_call.1} parent=1 // pred_check_branch
      %9 = sbr.rel (0) target = $region5
    $region4: #{tpu_custom_call.1} parent=1 // pred_region
      %s11 = ssub.s32 256, 256
      %12 = vsyncadd [#allocation3], %s11
      %s14 = sshll.u32 [#allocation2], 4
      %s15 = int_to_ptr.vmem [resolvable:$true] %s14
      %17 = dma.hbm_to_vmem [thread:$0]  %s0, 256, %s15, [#allocation3]
    $region5: #{tpu_custom_call.1} parent=1 // pred_fallthru
      _
    // Predicated region
    $region6: #{tpu_custom_call.1} parent=1 // pred_check
      _
    $region7: #{tpu_custom_call.1} parent=1 // pred_check_branch
      %19 = sbr.rel (0) target = $region9
    $region8: #{tpu_custom_call.1} parent=1 // pred_region
      %20 = dma.done [#allocation3], 256
    $region9: #{tpu_custom_call.1} parent=1 // pred_fallthru
      _
    %v21 = vld [vmem:[#allocation2] sm:$0xff]
    %v22 = vld [vmem:[#allocation2 + $0x8] sm:$0xff]
    %23 = vst [vmem:[#allocation5] sm:$0xff] %v21
    %24 = vst [vmem:[#allocation5 + $0x8] sm:$0xff] %v22
    // Predicated region
    $region10: #{tpu_custom_call.1} parent=1 // pred_check
      _
    $region11: #{tpu_custom_call.1} parent=1 // pred_check_branch
      %26 = sbr.rel (0) target = $region13
    $region12: #{tpu_custom_call.1} parent=1 // pred_region
      %s28 = ssub.s32 256, 256
      %29 = vsyncadd [#allocation4], %s28
      %s31 = sshll.u32 [#allocation5], 4
      %s32 = int_to_ptr.vmem [resolvable:$true] %s31
      %34 = dma.vmem_to_hbm [thread:$0]  %s32, 256, %s1, [#allocation4]
    $region13: #{tpu_custom_call.1} parent=1 // pred_fallthru
      _
    // Predicated region
    $region14: #{tpu_custom_call.1} parent=1 // pred_check
      _
    $region15: #{tpu_custom_call.1} parent=1 // pred_check_branch
      %36 = sbr.rel (0) target = $region17
    $region16: #{tpu_custom_call.1} parent=1 // pred_region
      %37 = dma.done [#allocation4], 256
    $region17: #{tpu_custom_call.1} parent=1 // pred_fallthru
      _
    %38 = vsyncpa [#allocation3], 1
    %39 = vsyncpa [#allocation4], 1

</llo_original>
